<compile_context>
chip_gen: v5e
topology: v5e:2x2
jax: 0.10.0
libtpu: 0.0.40
codegen_flags: <defaults>
</compile_context>

<pallas_src>
import functools
import math

import jax
import jax.numpy as jnp
from jax import lax
from jax.experimental import pallas as pl
from jax.experimental.pallas import tpu as pltpu


def _erf_poly(x):
    """Abramowitz & Stegun 7.1.26 erf (|abs err| < 1.5e-7).

    Only mul/add/exp/select, so it lowers on every TPU generation without
    relying on a hardware erf, while matching exact GELU far below tolerance.
    """
    p = jnp.float32(0.3275911)
    a1 = jnp.float32(0.254829592)
    a2 = jnp.float32(-0.284496736)
    a3 = jnp.float32(1.421413741)
    a4 = jnp.float32(-1.453152027)
    a5 = jnp.float32(1.061405429)
    z = jnp.abs(x)
    t = 1.0 / (1.0 + p * z)
    poly = ((((a5 * t + a4) * t + a3) * t + a2) * t + a1) * t
    e = 1.0 - poly * jnp.exp(-z * z)
    return jnp.where(x < 0, -e, e)


def _split_attention_kernel(x_ref, w1t_ref, w2t_ref, o_ref, *, c, chunk):
    # x_ref : (Bt, K, HWf, CF)   lane-folded input, CF = F*C (multiple of 128)
    # w1t   : (C, C)             = mlp1.weight.T  (contraction on sublane axis)
    # w2t   : (C, K*C)           = mlp2.weight.T  (column j = k*C + d)
    # o_ref : (Bt, HWf, CF)
    bt, kk, hwf, cf = x_ref.shape
    f = cf // c
    n_chunks = hwf // chunk

    # ---- pass 1: global pooling a[b,c0] = sum_{k,spatial} x, f32 accumulate ----
    # Chunked over HWf so live temporaries stay O(chunk), not O(block).
    def pool_chunk(start):
        part = jnp.zeros((bt, cf), jnp.float32)
        for ki in range(kk):                                   # K small: unrolled
            xk = x_ref[:, ki, pl.ds(start, chunk), :]
            part = part + jnp.sum(xk.astype(jnp.float32), axis=1)
        return part

    if n_chunks == 1:
        a_cf = pool_chunk(0)
    else:
        def pool_body(s, acc):
            start = pl.multiple_of(s * chunk, chunk)
            return acc + pool_chunk(start)
        a_cf = lax.fori_loop(0, n_chunks, pool_body,
                             jnp.zeros((bt, cf), jnp.float32))

    # collapse the lane fold: lanes fi*C + c0 all carry channel c0
    a = a_cf[:, 0:c]
    for fi in range(1, f):
        a = a + a_cf[:, fi * c:(fi + 1) * c]                   # (Bt, C) f32

    # ---- pass 2: mlp1 -> exact GELU -> mlp2 -> softmax over K (all tiny) ----
    wdt = w1t_ref.dtype
    h1 = jnp.dot(a.astype(wdt), w1t_ref[...],
                 preferred_element_type=jnp.float32)           # (Bt, C)
    inv_sqrt2 = jnp.float32(1.0 / math.sqrt(2.0))
    g = 0.5 * h1 * (1.0 + _erf_poly(h1 * inv_sqrt2))           # exact GELU
    hat = jnp.dot(g.astype(wdt), w2t_ref[...],
                  preferred_element_type=jnp.float32)          # (Bt, K*C)

    # softmax over the K axis, via static per-k lane slices (no in-kernel reshape)
    hk = [hat[:, ki * c:(ki + 1) * c] for ki in range(kk)]     # K x (Bt, C)
    m = hk[0]
    for ki in range(1, kk):
        m = jnp.maximum(m, hk[ki])
    ek = [jnp.exp(h - m) for h in hk]
    den = ek[0]
    for ki in range(1, kk):
        den = den + ek[ki]
    inv = 1.0 / den                                            # exact (tiny array)

    # replicate per-channel weights across the lane fold; streaming MAC dtype is
    # the input dtype (bf16 MAC on bf16-capable VPUs, exact f32 for f32 inputs).
    xdt = x_ref.dtype
    bar_w = [jnp.tile(e * inv, (1, f)).astype(xdt)[:, None, :] for e in ek]

    # ---- pass 3: weighted sum over K, HWf-chunked streaming MAC + store ----
    def ws_chunk(start):
        acc = bar_w[0] * x_ref[:, 0, pl.ds(start, chunk), :]
        for ki in range(1, kk):
            acc = acc + bar_w[ki] * x_ref[:, ki, pl.ds(start, chunk), :]
        o_ref[:, pl.ds(start, chunk), :] = acc.astype(o_ref.dtype)

    if n_chunks == 1:
        ws_chunk(0)
    else:
        def ws_body(s, carry):
            start = pl.multiple_of(s * chunk, chunk)
            ws_chunk(start)
            return carry
        lax.fori_loop(0, n_chunks, ws_body, 0)


def _lane_fold(hw, c):
    """Smallest F with (F*C) % 128 == 0 and F | HW (lane-dense, unmasked stores)."""
    if c % 128 == 0:
        return 1
    f0 = 128 // math.gcd(c, 128)
    f = f0
    while f <= hw:
        if hw % f == 0:
            return f
        f += f0
    return 1


def _pick_chunk(hwf):
    """HWf chunk for the in-kernel streaming loops (multiple of 8, divides HWf)."""
    if hwf <= 512 or hwf % 8 != 0:
        return hwf
    for cand in range(512, 63, -8):
        if hwf % cand == 0:
            return cand
    return hwf


def _vmem_capacity_bytes():
    try:
        return int(pltpu.get_tpu_info().vmem_capacity_bytes)
    except Exception:
        return 64 * 1024 * 1024          # conservative fallback (v7x per-core VMEM)


def _pick_bt(b, kk, hwf, cf, x_itemsize, w_bytes, chunk):
    """Batch elements per grid step + vmem limit, from per-generation capacity."""
    cap = _vmem_capacity_bytes()
    vmem_limit = int(cap * 0.85)
    budget = int(cap * 0.60) - 2 * w_bytes          # block budget minus resident weights
    per_b = (kk + 1) * hwf * cf * x_itemsize * 2    # double-buffered x + out blocks
    per_b += 2 * chunk * cf * 4                     # in-kernel f32 chunk temporaries
    per_b += 4 * cf * 4                             # pooled accumulators etc. (tiny)
    bt = max(1, min(b, budget // max(per_b, 1)))
    # keep >= 2 grid steps so megacore / dual-TensorCore chips both get work
    while bt > 1 and pl.cdiv(b, bt) < 2:
        bt -= 1
    while b % bt != 0:
        bt -= 1
    return bt, vmem_limit


def split_attention(x_all, w1, w2, k):
    """x_all: (B,K,H,W,C); w1: (C,C); w2: (K*C,C) (PyTorch Linear layout) -> (B,H,W,C)."""
    b, kk, h, w_, c = x_all.shape
    assert kk == k
    assert w1.shape == (c, c) and w2.shape == (k * c, c)
    hw = h * w_

    f = _lane_fold(hw, c)
    hwf = hw // f
    cf = c * f

    # Row-major contiguity => folding F consecutive spatial positions into the
    # lane axis is a pure relabeling: x[b,k,s*F+fi,c0] -> xf[b,k,s,fi*C+c0].
    xf = x_all.reshape(b, kk, hwf, cf)
    # Pre-transpose weights once in XLA so both in-kernel matmuls are plain
    # (Bt,C)@(C,·) MXU feeds (contraction on the rhs sublane axis).
    w1t = w1.T                                    # (C, C)
    w2t = w2.T                                    # (C, K*C)

    chunk = _pick_chunk(hwf)
    w_bytes = (w1t.size + w2t.size) * jnp.dtype(w1.dtype).itemsize
    bt, vmem_limit = _pick_bt(b, kk, hwf, cf,
                              jnp.dtype(x_all.dtype).itemsize, w_bytes, chunk)

    # TODO(synk): for feature maps where even a (1, K, HW, C) block cannot fit
    # VMEM, split into a pooling pass plus an HW-tiled weighted-sum pass so an
    # HW grid axis can also be marked "parallel".

    kernel = functools.partial(_split_attention_kernel, c=c, chunk=chunk)
    out = pl.pallas_call(
        kernel,
        out_shape=jax.ShapeDtypeStruct((b, hwf, cf), x_all.dtype),
        grid_spec=pltpu.PrefetchScalarGridSpec(
            num_scalar_prefetch=0,
            grid=(b // bt,),
            in_specs=[
                pl.BlockSpec((bt, kk, hwf, cf), lambda i: (i, 0, 0, 0)),
                pl.BlockSpec((c, c), lambda i: (0, 0)),
                pl.BlockSpec((c, k * c), lambda i: (0, 0)),
            ],
            out_specs=pl.BlockSpec((bt, hwf, cf), lambda i: (i, 0, 0)),
        ),
        compiler_params=pltpu.CompilerParams(
            dimension_semantics=("parallel",),
            vmem_limit_bytes=vmem_limit,
        ),
    )(xf, w1t, w2t)
    return out.reshape(b, h, w_, c)


def split_attention_ref(x_all, w1, w2, k):
    """Pure-JAX reference mirroring the PyTorch forward (f32 math, exact erf GELU)."""
    b, kk, h, w_, c = x_all.shape
    x = x_all.reshape(b, kk, h * w_, c).astype(jnp.float32)
    a = jnp.sum(jnp.sum(x, axis=1), axis=1)                       # (B, C)
    h1 = a @ w1.astype(jnp.float32).T
    g = 0.5 * h1 * (1.0 + jax.lax.erf(h1 / math.sqrt(2.0)))       # exact GELU
    hat = (g @ w2.astype(jnp.float32).T).reshape(b, k, c)         # (B, K, C)
    bar = jax.nn.softmax(hat, axis=1)                             # softmax over K
    out = jnp.sum(bar[:, :, None, :] * x, axis=1)                 # (B, HW, C)
    return out.reshape(b, h, w_, c).astype(x_all.dtype)


if __name__ == "__main__":
    B, K, H, W, C = 2, 3, 8, 8, 32

    key = jax.random.PRNGKey(0)
    kx, k1, k2 = jax.random.split(key, 3)
    x_all = jax.random.normal(kx, (B, K, H, W, C), dtype=jnp.float32)
    # Deterministic "Linear" weights (PyTorch layout: (out_features, in_features))
    w1 = jax.random.normal(k1, (C, C), dtype=jnp.float32) * (1.0 / math.sqrt(C))
    w2 = jax.random.normal(k2, (C * K, C), dtype=jnp.float32) * (1.0 / math.sqrt(C))

    out = jax.block_until_ready(split_attention(x_all, w1, w2, K))
    ref = split_attention_ref(x_all, w1, w2, K)

    assert out.shape == (B, H, W, C)
    assert jnp.allclose(out, ref, atol=2e-3, rtol=2e-3), "mismatch vs reference"

    print("KERNEL_OK")
</pallas_src>

<mosaic_0001>
module attributes {stable_mosaic.version = 11 : i64} {
  func.func @_split_attention_kernel(%arg0: i32, %arg1: memref<1x3x16x128xf32, #tpu.memory_space<vmem>>, %arg2: memref<32x32xf32, #tpu.memory_space<vmem>>, %arg3: memref<32x96xf32, #tpu.memory_space<vmem>>, %arg4: memref<1x16x128xf32, #tpu.memory_space<vmem>>) attributes {dimension_semantics = [#tpu.dimension_semantics<parallel>], iteration_bounds = array<i64: 2>, scalar_prefetch = 0 : i64, scratch_operands = 0 : i64, tpu.core_type = #tpu.core_type<tc>, window_params = [{transform_indices = @transform_0, window_bounds = array<i64: 1, 3, 16, 128>}, {pipeline_mode = #tpu.pipeline_mode<synchronous>, transform_indices = @transform_1, window_bounds = array<i64: 32, 32>}, {pipeline_mode = #tpu.pipeline_mode<synchronous>, transform_indices = @transform_2, window_bounds = array<i64: 32, 96>}, {transform_indices = @transform_3, window_bounds = array<i64: 1, 16, 128>}]} {
    %cst = arith.constant 0.000000e+00 : f32
    %0 = vector.broadcast %cst : f32 to vector<1x128xf32>
    %c0 = arith.constant 0 : index
    %c0_0 = arith.constant 0 : index
    %c0_1 = arith.constant 0 : index
    %c0_2 = arith.constant 0 : index
    %1 = vector.load %arg1[%c0, %c0_0, %c0_1, %c0_2] : memref<1x3x16x128xf32, #tpu.memory_space<vmem>>, vector<1x1x16x128xf32>
    %2 = vector.shape_cast %1 : vector<1x1x16x128xf32> to vector<1x16x128xf32>
    %cst_3 = arith.constant dense<0.000000e+00> : vector<1x128xf32>
    %3 = vector.multi_reduction <add>, %2, %cst_3 [1] : vector<1x16x128xf32> to vector<1x128xf32>
    %4 = arith.addf %0, %3 : vector<1x128xf32>
    %c0_4 = arith.constant 0 : index
    %c1 = arith.constant 1 : index
    %c0_5 = arith.constant 0 : index
    %c0_6 = arith.constant 0 : index
    %5 = vector.load %arg1[%c0_4, %c1, %c0_5, %c0_6] : memref<1x3x16x128xf32, #tpu.memory_space<vmem>>, vector<1x1x16x128xf32>
    %6 = vector.shape_cast %5 : vector<1x1x16x128xf32> to vector<1x16x128xf32>
    %cst_7 = arith.constant dense<0.000000e+00> : vector<1x128xf32>
    %7 = vector.multi_reduction <add>, %6, %cst_7 [1] : vector<1x16x128xf32> to vector<1x128xf32>
    %8 = arith.addf %4, %7 : vector<1x128xf32>
    %c0_8 = arith.constant 0 : index
    %c2 = arith.constant 2 : index
    %c0_9 = arith.constant 0 : index
    %c0_10 = arith.constant 0 : index
    %9 = vector.load %arg1[%c0_8, %c2, %c0_9, %c0_10] : memref<1x3x16x128xf32, #tpu.memory_space<vmem>>, vector<1x1x16x128xf32>
    %10 = vector.shape_cast %9 : vector<1x1x16x128xf32> to vector<1x16x128xf32>
    %cst_11 = arith.constant dense<0.000000e+00> : vector<1x128xf32>
    %11 = vector.multi_reduction <add>, %10, %cst_11 [1] : vector<1x16x128xf32> to vector<1x128xf32>
    %12 = arith.addf %8, %11 : vector<1x128xf32>
    %13 = vector.extract_strided_slice %12 {offsets = [0, 0], sizes = [1, 32], strides = [1, 1]} : vector<1x128xf32> to vector<1x32xf32>
    %14 = vector.extract_strided_slice %12 {offsets = [0, 32], sizes = [1, 32], strides = [1, 1]} : vector<1x128xf32> to vector<1x32xf32>
    %15 = arith.addf %13, %14 : vector<1x32xf32>
    %16 = vector.extract_strided_slice %12 {offsets = [0, 64], sizes = [1, 32], strides = [1, 1]} : vector<1x128xf32> to vector<1x32xf32>
    %17 = arith.addf %15, %16 : vector<1x32xf32>
    %18 = vector.extract_strided_slice %12 {offsets = [0, 96], sizes = [1, 32], strides = [1, 1]} : vector<1x128xf32> to vector<1x32xf32>
    %19 = arith.addf %17, %18 : vector<1x32xf32>
    %c0_12 = arith.constant 0 : index
    %c0_13 = arith.constant 0 : index
    %20 = vector.load %arg2[%c0_12, %c0_13] : memref<32x32xf32, #tpu.memory_space<vmem>>, vector<32x32xf32>
    %cst_14 = arith.constant dense<0.000000e+00> : vector<1x32xf32>
    %21 = tpu.matmul %19, %20, %cst_14 {dimension_numbers = #tpu.dot_dimension_numbers<[1], [0], [0], [1], [0, 0, 1, 1], [], []>} : vector<1x32xf32>, vector<32x32xf32>, vector<1x32xf32> -> vector<1x32xf32>
    %cst_15 = arith.constant 5.000000e-01 : f32
    %22 = vector.broadcast %cst_15 : f32 to vector<1x32xf32>
    %23 = arith.mulf %22, %21 : vector<1x32xf32>
    %cst_16 = arith.constant 0.707106769 : f32
    %24 = vector.broadcast %cst_16 : f32 to vector<1x32xf32>
    %25 = arith.mulf %21, %24 : vector<1x32xf32>
    %26 = math.absf %25 : vector<1x32xf32>
    %cst_17 = arith.constant 0.327591091 : f32
    %27 = vector.broadcast %cst_17 : f32 to vector<1x32xf32>
    %28 = arith.mulf %27, %26 : vector<1x32xf32>
    %cst_18 = arith.constant 1.000000e+00 : f32
    %29 = vector.broadcast %cst_18 : f32 to vector<1x32xf32>
    %30 = arith.addf %29, %28 : vector<1x32xf32>
    %cst_19 = arith.constant 1.000000e+00 : f32
    %31 = vector.broadcast %cst_19 : f32 to vector<1x32xf32>
    %32 = arith.divf %31, %30 : vector<1x32xf32>
    %cst_20 = arith.constant 1.06140542 : f32
    %33 = vector.broadcast %cst_20 : f32 to vector<1x32xf32>
    %34 = arith.mulf %33, %32 : vector<1x32xf32>
    %cst_21 = arith.constant -1.45315206 : f32
    %35 = vector.broadcast %cst_21 : f32 to vector<1x32xf32>
    %36 = arith.addf %34, %35 : vector<1x32xf32>
    %37 = arith.mulf %36, %32 : vector<1x32xf32>
    %cst_22 = arith.constant 1.42141378 : f32
    %38 = vector.broadcast %cst_22 : f32 to vector<1x32xf32>
    %39 = arith.addf %37, %38 : vector<1x32xf32>
    %40 = arith.mulf %39, %32 : vector<1x32xf32>
    %cst_23 = arith.constant -0.284496725 : f32
    %41 = vector.broadcast %cst_23 : f32 to vector<1x32xf32>
    %42 = arith.addf %40, %41 : vector<1x32xf32>
    %43 = arith.mulf %42, %32 : vector<1x32xf32>
    %cst_24 = arith.constant 0.254829586 : f32
    %44 = vector.broadcast %cst_24 : f32 to vector<1x32xf32>
    %45 = arith.addf %43, %44 : vector<1x32xf32>
    %46 = arith.mulf %45, %32 : vector<1x32xf32>
    %cst_25 = arith.constant 0.000000e+00 : f32
    %47 = vector.broadcast %cst_25 : f32 to vector<1x32xf32>
    %48 = arith.subf %47, %26 : vector<1x32xf32>
    %49 = arith.mulf %48, %26 : vector<1x32xf32>
    %50 = math.exp %49 : vector<1x32xf32>
    %51 = arith.mulf %46, %50 : vector<1x32xf32>
    %cst_26 = arith.constant 1.000000e+00 : f32
    %52 = vector.broadcast %cst_26 : f32 to vector<1x32xf32>
    %53 = arith.subf %52, %51 : vector<1x32xf32>
    %cst_27 = arith.constant 0.000000e+00 : f32
    %54 = vector.broadcast %cst_27 : f32 to vector<1x32xf32>
    %55 = arith.cmpf olt, %25, %54 : vector<1x32xf32>
    %cst_28 = arith.constant 0.000000e+00 : f32
    %56 = vector.broadcast %cst_28 : f32 to vector<1x32xf32>
    %57 = arith.subf %56, %53 : vector<1x32xf32>
    %58 = arith.select %55, %57, %53 : vector<1x32xi1>, vector<1x32xf32>
    %cst_29 = arith.constant 1.000000e+00 : f32
    %59 = vector.broadcast %cst_29 : f32 to vector<1x32xf32>
    %60 = arith.addf %59, %58 : vector<1x32xf32>
    %61 = arith.mulf %23, %60 : vector<1x32xf32>
    %c0_30 = arith.constant 0 : index
    %c0_31 = arith.constant 0 : index
    %62 = vector.load %arg3[%c0_30, %c0_31] : memref<32x96xf32, #tpu.memory_space<vmem>>, vector<32x96xf32>
    %cst_32 = arith.constant dense<0.000000e+00> : vector<1x96xf32>
    %63 = tpu.matmul %61, %62, %cst_32 {dimension_numbers = #tpu.dot_dimension_numbers<[1], [0], [0], [1], [0, 0, 1, 1], [], []>} : vector<1x32xf32>, vector<32x96xf32>, vector<1x96xf32> -> vector<1x96xf32>
    %64 = vector.extract_strided_slice %63 {offsets = [0, 0], sizes = [1, 32], strides = [1, 1]} : vector<1x96xf32> to vector<1x32xf32>
    %65 = vector.extract_strided_slice %63 {offsets = [0, 32], sizes = [1, 32], strides = [1, 1]} : vector<1x96xf32> to vector<1x32xf32>
    %66 = vector.extract_strided_slice %63 {offsets = [0, 64], sizes = [1, 32], strides = [1, 1]} : vector<1x96xf32> to vector<1x32xf32>
    %67 = arith.maximumf %64, %65 : vector<1x32xf32>
    %68 = arith.maximumf %67, %66 : vector<1x32xf32>
    %69 = arith.subf %64, %68 : vector<1x32xf32>
    %70 = math.exp %69 : vector<1x32xf32>
    %71 = arith.subf %65, %68 : vector<1x32xf32>
    %72 = math.exp %71 : vector<1x32xf32>
    %73 = arith.subf %66, %68 : vector<1x32xf32>
    %74 = math.exp %73 : vector<1x32xf32>
    %75 = arith.addf %70, %72 : vector<1x32xf32>
    %76 = arith.addf %75, %74 : vector<1x32xf32>
    %cst_33 = arith.constant 1.000000e+00 : f32
    %77 = vector.broadcast %cst_33 : f32 to vector<1x32xf32>
    %78 = arith.divf %77, %76 : vector<1x32xf32>
    %79 = arith.mulf %70, %78 : vector<1x32xf32>
    %80 = tpu.concatenate %79, %79, %79, %79 in 1 : vector<1x32xf32>, vector<1x32xf32>, vector<1x32xf32>, vector<1x32xf32> -> vector<1x128xf32>
    %81 = vector.shape_cast %80 : vector<1x128xf32> to vector<1x1x128xf32>
    %82 = arith.mulf %72, %78 : vector<1x32xf32>
    %83 = tpu.concatenate %82, %82, %82, %82 in 1 : vector<1x32xf32>, vector<1x32xf32>, vector<1x32xf32>, vector<1x32xf32> -> vector<1x128xf32>
    %84 = vector.shape_cast %83 : vector<1x128xf32> to vector<1x1x128xf32>
    %85 = arith.mulf %74, %78 : vector<1x32xf32>
    %86 = tpu.concatenate %85, %85, %85, %85 in 1 : vector<1x32xf32>, vector<1x32xf32>, vector<1x32xf32>, vector<1x32xf32> -> vector<1x128xf32>
    %87 = vector.shape_cast %86 : vector<1x128xf32> to vector<1x1x128xf32>
    %c0_34 = arith.constant 0 : index
    %c0_35 = arith.constant 0 : index
    %c0_36 = arith.constant 0 : index
    %c0_37 = arith.constant 0 : index
    %88 = vector.load %arg1[%c0_34, %c0_35, %c0_36, %c0_37] : memref<1x3x16x128xf32, #tpu.memory_space<vmem>>, vector<1x1x16x128xf32>
    %89 = vector.shape_cast %88 : vector<1x1x16x128xf32> to vector<1x16x128xf32>
    %90 = vector.broadcast %81 : vector<1x1x128xf32> to vector<1x16x128xf32>
    %91 = arith.mulf %90, %89 : vector<1x16x128xf32>
    %c0_38 = arith.constant 0 : index
    %c1_39 = arith.constant 1 : index
    %c0_40 = arith.constant 0 : index
    %c0_41 = arith.constant 0 : index
    %92 = vector.load %arg1[%c0_38, %c1_39, %c0_40, %c0_41] : memref<1x3x16x128xf32, #tpu.memory_space<vmem>>, vector<1x1x16x128xf32>
    %93 = vector.shape_cast %92 : vector<1x1x16x128xf32> to vector<1x16x128xf32>
    %94 = vector.broadcast %84 : vector<1x1x128xf32> to vector<1x16x128xf32>
    %95 = arith.mulf %94, %93 : vector<1x16x128xf32>
    %96 = arith.addf %91, %95 : vector<1x16x128xf32>
    %c0_42 = arith.constant 0 : index
    %c2_43 = arith.constant 2 : index
    %c0_44 = arith.constant 0 : index
    %c0_45 = arith.constant 0 : index
    %97 = vector.load %arg1[%c0_42, %c2_43, %c0_44, %c0_45] : memref<1x3x16x128xf32, #tpu.memory_space<vmem>>, vector<1x1x16x128xf32>
    %98 = vector.shape_cast %97 : vector<1x1x16x128xf32> to vector<1x16x128xf32>
    %99 = vector.broadcast %87 : vector<1x1x128xf32> to vector<1x16x128xf32>
    %100 = arith.mulf %99, %98 : vector<1x16x128xf32>
    %101 = arith.addf %96, %100 : vector<1x16x128xf32>
    %c0_46 = arith.constant 0 : index
    %c0_47 = arith.constant 0 : index
    %c0_48 = arith.constant 0 : index
    %102 = vector.load %arg4[%c0_46, %c0_47, %c0_48] : memref<1x16x128xf32, #tpu.memory_space<vmem>>, vector<1x16x128xf32>
    tpu.vector_store %arg4[%c0_46, %c0_47, %c0_48], %101 {strides = array<i32>} : memref<1x16x128xf32, #tpu.memory_space<vmem>>, vector<1x16x128xf32>,
    return
  }
  func.func @transform_0(%arg0: i32) -> (i32, i32, i32, i32) {
    %c0_i32 = arith.constant 0 : i32
    %c0_i32_0 = arith.constant 0 : i32
    %c0_i32_1 = arith.constant 0 : i32
    %c0_i32_2 = arith.constant 0 : i32
    return %arg0, %c0_i32, %c0_i32_0, %c0_i32_1 : i32, i32, i32, i32
  }
  func.func @transform_1(%arg0: i32) -> (i32, i32) {
    %c0_i32 = arith.constant 0 : i32
    %c0_i32_0 = arith.constant 0 : i32
    %c0_i32_1 = arith.constant 0 : i32
    return %c0_i32, %c0_i32_0 : i32, i32
  }
  func.func @transform_2(%arg0: i32) -> (i32, i32) {
    %c0_i32 = arith.constant 0 : i32
    %c0_i32_0 = arith.constant 0 : i32
    %c0_i32_1 = arith.constant 0 : i32
    return %c0_i32, %c0_i32_0 : i32, i32
  }
  func.func @transform_3(%arg0: i32) -> (i32, i32, i32) {
    %c0_i32 = arith.constant 0 : i32
    %c0_i32_0 = arith.constant 0 : i32
    %c0_i32_1 = arith.constant 0 : i32
    return %arg0, %c0_i32, %c0_i32_0 : i32, i32, i32
  }
}

</mosaic_0001>

<llo_original>
// kernel: tpu_custom_call.1
$region0: #{tpu_custom_call.1}
  #allocation0 [shape = 'u32[]', space=smem, size = 0x4, offset = 0x4, fixed_abs, tag = 'smem constant byte address 0x4 - core index']
  #allocation1 [shape = 'u32[72,128]{1,0:T(1,128)}', space=vmem, size = 0x9000, scoped, tag = 'internal scratch']
  %s0 = inlined_call_operand.hbm [shape: f32[2,3,16,128], index: 0, kind: input, shape index: {}]
  %s1 = inlined_call_operand.hbm [shape: f32[32,32], index: 1, kind: input, shape index: {}]
  %s2 = inlined_call_operand.hbm [shape: f32[32,96], index: 2, kind: input, shape index: {}]
  %s3 = inlined_call_operand.hbm [shape: f32[2,16,128], index: 3, kind: output, shape index: {}]
  %s4 = sld [smem:[#allocation0]]
  $region57: #{tpu_custom_call.1} parent=0
    _
  %s6 = ssub.s32 1, %s4
  %s7 = scalar_select 0, %s6, %s4
  $region1: #{tpu_custom_call.1} parent=0
    #allocation2 [shape = 'u8[49152]{0}', space=vmem, size = 0xc000, scoped, tag = 'input window, operand 0']
    #allocation3 [shape = 's32[2]{0}', space=sflag, size = 0x8, scoped, tag = 'scoped memory for tpu_custom_call.1']
    #allocation4 [shape = 's32[2]{0}', space=sflag, size = 0x8, scoped, tag = 'scoped memory for tpu_custom_call.1']
    #allocation5 [shape = 'u8[16384]{0}', space=vmem, size = 0x4000, scoped, tag = 'input window, operand 1, single buffered']
    #allocation6 [shape = 's32[1]{0}', space=sflag, size = 0x4, scoped, tag = 'scoped memory for tpu_custom_call.1']
    #allocation7 [shape = 'u8[16384]{0}', space=vmem, size = 0x4000, scoped, tag = 'input window, operand 2, single buffered']
    #allocation8 [shape = 'u8[16384]{0}', space=vmem, size = 0x4000, scoped, tag = 'output window, operand 0']
    %8 = vsyncpa [#allocation3], 0
    %s9 = scalar_lea.sflag [#allocation3], 1
    %10 = vsyncpa %s9, 0
    %11 = vsyncpa [#allocation6], 0
    %12 = vsyncpa [#allocation4], 0
    %s13 = scalar_lea.sflag [#allocation4], 1
    %14 = vsyncpa %s13, 0
    loop: start=0, step=1, limit=4
    $region2: #{tpu_custom_call.1} parent=1 // loop_pre_header
      _
    $region3: #{tpu_custom_call.1} parent=1 // loop_header
      %s16 = sphi 0, %s20
      %p17 = scmp.ge.s32.totalorder %s16, 4
      %s26 = sphi 0, %s28
      %s29 = sphi 0, %s26
      %s30 = sphi 0, %s29
      %s46 = sphi 0, %s30
      %s50 = sphi 0, %s50
      %s52 = sphi 0, %s50
      %s53 = sphi 0, %s52
      %s67 = sphi 0, %s53
      %s71 = sphi 0, %s71
      %s73 = sphi 0, %s71
      %s74 = sphi 0, %s73
      %s88 = sphi 0, %s74
      %s94 = sphi 0, %s96
      %s97 = sphi 0, %s94
      %s98 = sphi 0, %s97
      %s114 = sphi 0, %s98
    $region4: #{tpu_custom_call.1} parent=1 // loop_header_branch
      %19 = sbr.rel (%p17) target = $region8
    $region5: #{tpu_custom_call.1} parent=1 // loop_body
      %s21 = ssub.s32 %s16, 1
      %s22 = ssub.s32 %s16, 2
      %s23 = sadd.s32 %s16, 1
      %s24 = ssub.s32 %s16, %s23
      %p25 = scmp.eq.s32.totalorder %s24, 0
      %s27 = sadd.s32 %s26, 1
      %s28 = scalar_select %p25, %s26, %s27
      %p31 = pneg %p25
      %p32 = scmp.eq.s32.totalorder %s16, 1
      %p33 = por %p31, %p32
      %p34 = scmp.ne.s32.totalorder %s26, %s29
      %p35 = scmp.eq.s32.totalorder %s16, 0
      %p36 = por %p34, %p35
      %p37 = scmp.ne.s32.totalorder %s26, %s29
      %p38 = scmp.eq.s32.totalorder %s21, 1
      %p39 = por %p37, %p38
      %p40 = scmp.ne.s32.totalorder %s29, %s30
      %p41 = scmp.eq.s32.totalorder %s21, 0
      %p42 = por %p40, %p41
      %p43 = scmp.ne.s32.totalorder %s29, %s30
      %p44 = scmp.eq.s32.totalorder %s22, 1
      %p45 = por %p43, %p44
      %p47 = scmp.ne.s32.totalorder %s30, %s46
      %p48 = scmp.eq.s32.totalorder %s22, 0
      %p49 = por %p47, %p48
      %s51 = sadd.s32 %s50, 1
      %p54 = scmp.eq.s32.totalorder %s16, 1
      %p55 = scmp.ne.s32.totalorder %s50, %s52
      %p56 = scmp.eq.s32.totalorder %s16, 0
      %p57 = por %p55, %p56
      %p58 = scmp.ne.s32.totalorder %s50, %s52
      %p59 = scmp.eq.s32.totalorder %s21, 1
      %p60 = por %p58, %p59
      %p61 = scmp.ne.s32.totalorder %s52, %s53
      %p62 = scmp.eq.s32.totalorder %s21, 0
      %p63 = por %p61, %p62
      %p64 = scmp.ne.s32.totalorder %s52, %s53
      %p65 = scmp.eq.s32.totalorder %s22, 1
      %p66 = por %p64, %p65
      %p68 = scmp.ne.s32.totalorder %s53, %s67
      %p69 = scmp.eq.s32.totalorder %s22, 0
      %p70 = por %p68, %p69
      %s72 = sadd.s32 %s71, 1
      %p75 = scmp.eq.s32.totalorder %s16, 1
      %p76 = scmp.ne.s32.totalorder %s71, %s73
      %p77 = scmp.eq.s32.totalorder %s16, 0
      %p78 = por %p76, %p77
      %p79 = scmp.ne.s32.totalorder %s71, %s73
      %p80 = scmp.eq.s32.totalorder %s21, 1
      %p81 = por %p79, %p80
      %p82 = scmp.ne.s32.totalorder %s73, %s74
      %p83 = scmp.eq.s32.totalorder %s21, 0
      %p84 = por %p82, %p83
      %p85 = scmp.ne.s32.totalorder %s73, %s74
      %p86 = scmp.eq.s32.totalorder %s22, 1
      %p87 = por %p85, %p86
      %p89 = scmp.ne.s32.totalorder %s74, %s88
      %p90 = scmp.eq.s32.totalorder %s22, 0
      %p91 = por %p89, %p90
      %s92 = ssub.s32 %s16, %s23
      %p93 = scmp.eq.s32.totalorder %s92, 0
      %s95 = sadd.s32 %s94, 1
      %s96 = scalar_select %p93, %s94, %s95
      %p99 = pneg %p93
      %p100 = scmp.eq.s32.totalorder %s16, 1
      %p101 = por %p99, %p100
      %p102 = scmp.ne.s32.totalorder %s94, %s97
      %p103 = scmp.eq.s32.totalorder %s16, 0
      %p104 = por %p102, %p103
      %p105 = scmp.ne.s32.totalorder %s94, %s97
      %p106 = scmp.eq.s32.totalorder %s21, 1
      %p107 = por %p105, %p106
      %p108 = scmp.ne.s32.totalorder %s97, %s98
      %p109 = scmp.eq.s32.totalorder %s21, 0
      %p110 = por %p108, %p109
      %p111 = scmp.ne.s32.totalorder %s97, %s98
      %p112 = scmp.eq.s32.totalorder %s22, 1
      %p113 = por %p111, %p112
      %p115 = scmp.ne.s32.totalorder %s98, %s114
      %p116 = scmp.eq.s32.totalorder %s22, 0
      %p117 = por %p115, %p116
      %p118 = scmp.le.s32.totalorder 1, %s16
      %p119 = scmp.lt.s32.totalorder %s16, 3
      %p120 = pnand %p118, %p119
      %p121 = pneg %p120
      // Predicated region
      $region9: #{tpu_custom_call.1} parent=5 // pred_check
        _
      $region10: #{tpu_custom_call.1} parent=5 // pred_check_branch
        %123 = sbr.rel (%p120) target = $region12
      $region11: #{tpu_custom_call.1} parent=5 // pred_region
        %s124 = ssub.s32 %s16, 1
        // Predicated region
        $region13: #{tpu_custom_call.1} parent=11 // pred_check
          %p125 = pneg %p63
        $region14: #{tpu_custom_call.1} parent=11 // pred_check_branch
          %127 = sbr.rel (%p125) target = $region16
        $region15: #{tpu_custom_call.1} parent=11 // pred_region
          %129 = vsyncadd [#allocation6], 0
          %s130 = sshll.u32 %s1, 4
          %s131 = int_to_ptr.hbm [resolvable:$true] %s130
          %s132 = sshll.u32 [#allocation5], 4
          %s133 = int_to_ptr.vmem [resolvable:$true] %s132
          %138 = dma.hbm_to_vmem [thread:$0]  %s131, 512, %s133, [#allocation6], 128, 128, 8
        $region16: #{tpu_custom_call.1} parent=11 // pred_fallthru
          _
        // Predicated region
        $region17: #{tpu_custom_call.1} parent=11 // pred_check
          %p139 = pneg %p84
        $region18: #{tpu_custom_call.1} parent=11 // pred_check_branch
          %141 = sbr.rel (%p139) target = $region20
        $region19: #{tpu_custom_call.1} parent=11 // pred_region
          %143 = vsyncadd [#allocation6], 0
          %s144 = sshll.u32 %s2, 4
          %s145 = int_to_ptr.hbm [resolvable:$true] %s144
          %s146 = sshll.u32 [#allocation7], 4
          %s147 = int_to_ptr.vmem [resolvable:$true] %s146
          %152 = dma.hbm_to_vmem [thread:$0]  %s145, 512, %s147, [#allocation6], 128, 128, 8
        $region20: #{tpu_custom_call.1} parent=11 // pred_fallthru
          _
      $region12: #{tpu_custom_call.1} parent=5 // pred_fallthru
        _
      %p153 = scmp.lt.s32.totalorder %s16, 2
      // Predicated region
      $region21: #{tpu_custom_call.1} parent=5 // pred_check
        %p154 = pneg %p153
      $region22: #{tpu_custom_call.1} parent=5 // pred_check_branch
        %156 = sbr.rel (%p154) target = $region24
      $region23: #{tpu_custom_call.1} parent=5 // pred_region
        // Predicated region
        $region25: #{tpu_custom_call.1} parent=23 // pred_check
          %p157 = pneg %p36
        $region26: #{tpu_custom_call.1} parent=23 // pred_check_branch
          %159 = sbr.rel (%p157) target = $region28
        $region27: #{tpu_custom_call.1} parent=23 // pred_region
          %s160 = sand.u32 %s26, 1
          %s161 = scalar_lea.sflag [#allocation3], %s160
          %s162 = sand.u32 %s26, 1
          %s163 = smul.addr %s162, 48
          %s164 = scalar_lea.vmem [#allocation2], %s163
          %166 = vsyncadd %s161, 0
          %s167 = smul.addr %s16, 6
          %s168 = smul.addr %s167, 8
          %s169 = scalar_lea.hbm %s0, %s168
          %s170 = sshll.u32 %s169, 4
          %s171 = int_to_ptr.hbm [resolvable:$true] %s170
          %s172 = sshll.u32 %s164, 4
          %s173 = int_to_ptr.vmem [resolvable:$true] %s172
          %178 = dma.hbm_to_vmem [thread:$0]  %s171, 768, %s173, %s161, 128, 128, 8
        $region28: #{tpu_custom_call.1} parent=23 // pred_fallthru
          _
      $region24: #{tpu_custom_call.1} parent=5 // pred_fallthru
        _
      %p179 = scmp.le.s32.totalorder 1, %s16
      %p180 = scmp.lt.s32.totalorder %s16, 3
      %p181 = pnand %p179, %p180
      %p182 = pneg %p181
      // Predicated region
      $region29: #{tpu_custom_call.1} parent=5 // pred_check
        _
      $region30: #{tpu_custom_call.1} parent=5 // pred_check_branch
        %184 = sbr.rel (%p181) target = $region32
      $region31: #{tpu_custom_call.1} parent=5 // pred_region
        %s185 = ssub.s32 %s16, 1
        %s186 = sand.u32 %s29, 1
        %s187 = scalar_lea.sflag [#allocation3], %s186
        %s188 = sand.u32 %s29, 1
        %s189 = smul.addr %s188, 48
        %s190 = scalar_lea.vmem [#allocation2], %s189
        // Predicated region
        $region33: #{tpu_custom_call.1} parent=31 // pred_check
          %p191 = pneg %p42
        $region34: #{tpu_custom_call.1} parent=31 // pred_check_branch
          %193 = sbr.rel (%p191) target = $region36
        $region35: #{tpu_custom_call.1} parent=31 // pred_region
          %195 = dma.done %s187, 768
        $region36: #{tpu_custom_call.1} parent=31 // pred_fallthru
          _
        // Predicated region
        $region37: #{tpu_custom_call.1} parent=31 // pred_check
          %p196 = pneg %p63
        $region38: #{tpu_custom_call.1} parent=31 // pred_check_branch
          %198 = sbr.rel (%p196) target = $region40
        $region39: #{tpu_custom_call.1} parent=31 // pred_region
          %200 = dma.done [#allocation6], 512
        $region40: #{tpu_custom_call.1} parent=31 // pred_fallthru
          _
        // Predicated region
        $region41: #{tpu_custom_call.1} parent=31 // pred_check
          %p201 = pneg %p84
        $region42: #{tpu_custom_call.1} parent=31 // pred_check_branch
          %203 = sbr.rel (%p201) target = $region44
        $region43: #{tpu_custom_call.1} parent=31 // pred_region
          %205 = dma.done [#allocation6], 512
        $region44: #{tpu_custom_call.1} parent=31 // pred_fallthru
          _
        %s206 = sand.u32 %s29, 1
        %s207 = scalar_lea.sflag [#allocation3], %s206
        %s208 = sand.u32 %s29, 1
        %s209 = smul.addr %s208, 48
        %s210 = scalar_lea.vmem [#allocation2], %s209
        %p211 = pneg %p42
        %p212 = pneg %p39
        %p213 = pneg %p63
        %p214 = pneg %p60
        %p215 = pneg %p84
        %p216 = pneg %p81
        %p217 = pneg %p110
        %p218 = pneg %p107
        %s219 = sand.u32 %s97, 1
        %s220 = scalar_lea.sflag [#allocation4], %s219
        %s221 = sand.u32 %s97, 1
        %s222 = smul.addr %s221, 16
        %s223 = scalar_lea.vmem [#allocation8], %s222
        %v224 = vld [vmem:[%s190] sm:$0xff]
        %v225 = vld [vmem:[%s190 + $0x8] sm:$0xff]
        %v226 = vadd.f32 %v224, %v225
        %v227 = vrot.slane %v226, 4
        %v228 = vadd.f32 %v226, %v227
        %v229 = vrot.slane %v228, 2
        %v230 = vadd.f32 %v228, %v229
        %v231 = vrot.slane %v230, 1
        %v232 = vadd.f32 %v230, %v231
        %v233 = vadd.f32 %v232, 0.0
        %s234 = scalar_lea.vmem %s190, 16 [#allocation2]
        %v235 = vld [vmem:[%s234] sm:$0xff]
        %v236 = vld [vmem:[%s234 + $0x8] sm:$0xff]
        %v237 = vadd.f32 %v235, %v236
        %v238 = vrot.slane %v237, 4
        %v239 = vadd.f32 %v237, %v238
        %v240 = vrot.slane %v239, 2
        %v241 = vadd.f32 %v239, %v240
        %v242 = vrot.slane %v241, 1
        %v243 = vadd.f32 %v241, %v242
        %v244 = vadd.f32 %v233, %v243
        %s245 = scalar_lea.vmem %s190, 32 [#allocation2]
        %v246 = vld [vmem:[%s245] sm:$0xff]
        %v247 = vld [vmem:[%s245 + $0x8] sm:$0xff]
        %v248 = vadd.f32 %v246, %v247
        %v249 = vrot.slane %v248, 4
        %v250 = vadd.f32 %v248, %v249
        %v251 = vrot.slane %v250, 2
        %v252 = vadd.f32 %v250, %v251
        %v253 = vrot.slane %v252, 1
        %v254 = vadd.f32 %v252, %v253
        %v255 = vadd.f32 %v244, %v254
        %257 = vrot.lane.b32.xlu0 %v255, 96
        %v258 = vpop.permute.xlu0 %257
        %v260 = vadd.f32 %v255, %v258
        %261 = vrot.lane.b32.xlu0 %v255, 64
        %v262 = vpop.permute.xlu0 %261
        %v264 = vadd.f32 %v260, %v262
        %265 = vrot.lane.b32.xlu0 %v255, 32
        %v266 = vpop.permute.xlu0 %265
        %v268 = vadd.f32 %v264, %v266
        %v269 = vld [vmem:[#allocation5] sm:$0xff]
        %v270 = vld [vmem:[#allocation5 + $0x8] sm:$0xff]
        %v271 = vld [vmem:[#allocation5 + $0x10] sm:$0xff]
        %v272 = vld [vmem:[#allocation5 + $0x18] sm:$0xff]
        %vm273 = vcmask 261120
        %v275 = vsel %vm273, %v268, 0
        %277 = vmatpush.msra.mxu0 0.0
        %278 = vmatpush.msra.mxu0 0.0
        %279 = vmatpush.msra.mxu0 0.0
        %280 = vmatpush.msra.mxu0 0.0
        %281 = vmatpush.msra.mxu0 0.0
        %282 = vmatpush.msra.mxu0 0.0
        %283 = vmatpush.msra.mxu0 0.0
        %284 = vmatpush.msra.mxu0 0.0
        %285 = vmatpush.msra.mxu0 0.0
        %286 = vmatpush.msra.mxu0 0.0
        %287 = vmatpush.msra.mxu0 0.0
        %288 = vmatpush.msra.mxu0 0.0
        %289 = vmatpush.msra.mxu0 %v272
        %290 = vmatpush.msra.mxu0 %v271
        %291 = vmatpush.msra.mxu0 %v270
        %292 = vmatpush.msra.mxu0 %v269
        %293 = vmatmul.f32.gmra.mxu0 %v275
        %v294 = vpop.f32.mrf.mxu0
        %v295 = vadd.f32 0.0, %v294
        %296 = vdwg.mxu0
        %v297 = vmul.f32 %v295, 0.5
        %v298 = vmul.f32 %v295, 0.70710677
        %v299 = vand.u32 2147483647, %v298
        %v300 = vmul.f32 %v299, 0.3275911
        %v301 = vadd.f32 %v300, 1.0
        %v302 = vrcp.pop %v301
        %v303 = vmul.f32 %v301, %v302
        %v304 = vsub.f32 1.0, %v303
        %v305 = vmul.f32 %v302, %v304
        %v306 = vadd.f32 %v302, %v305
        %vm307 = vweird.f32 %v301
        %vm308 = vweird.f32 %v302
        %vm309 = vmor %vm307, %vm308
        %v310 = vsel %vm309, %v302, %v306
        %v311 = vand.u32 2147483647, %v301
        %vm312 = vcmp.eq.f32.partialorder %v311, 8.507059e+37
        %v313 = vand.u32 %v301, 2147483648
        %v314 = vor.u32 1.1754944e-38, %v313
        %v315 = vsel %vm312, %v314, %v310
        %v316 = vmul.f32 1.0, %v315
        %v317 = vmul.f32 %v316, 1.0614054
        %v318 = vadd.f32 %v317, -1.4531521
        %v319 = vmul.f32 %v318, %v316
        %v320 = vadd.f32 %v319, 1.4214138
        %v321 = vmul.f32 %v320, %v316
        %v322 = vadd.f32 %v321, -0.28449672
        %v323 = vmul.f32 %v322, %v316
        %v324 = vadd.f32 %v323, 0.2548296
        %v325 = vmul.f32 %v324, %v316
        %v326 = vsub.f32 0.0, %v299
        %v327 = vmul.f32 %v326, %v299
        %v328 = vmul.f32 %v327, 1.442695
        %v329 = vpow.pop %v328
        %v330 = vmul.f32 %v325, %v329
        %v331 = vsub.f32 1.0, %v330
        %vm332 = vcmp.lt.f32.partialorder %v298, 0.0
        %v333 = vsub.f32 0.0, %v331
        %v334 = vsel %vm332, %v333, %v331
        %v335 = vadd.f32 %v334, 1.0
        %v336 = vmul.f32 %v297, %v335
        %v337 = vld [vmem:[#allocation7] sm:$0xff]
        %v338 = vld [vmem:[#allocation7 + $0x8] sm:$0xff]
        %v339 = vld [vmem:[#allocation7 + $0x10] sm:$0xff]
        %v340 = vld [vmem:[#allocation7 + $0x18] sm:$0xff]
        %v342 = vsel %vm273, %v336, 0
        %344 = vmatpush.msra.mxu0 0.0
        %345 = vmatpush.msra.mxu0 0.0
        %346 = vmatpush.msra.mxu0 0.0
        %347 = vmatpush.msra.mxu0 0.0
        %348 = vmatpush.msra.mxu0 0.0
        %349 = vmatpush.msra.mxu0 0.0
        %350 = vmatpush.msra.mxu0 0.0
        %351 = vmatpush.msra.mxu0 0.0
        %352 = vmatpush.msra.mxu0 0.0
        %353 = vmatpush.msra.mxu0 0.0
        %354 = vmatpush.msra.mxu0 0.0
        %355 = vmatpush.msra.mxu0 0.0
        %356 = vmatpush.msra.mxu0 %v340
        %357 = vmatpush.msra.mxu0 %v339
        %358 = vmatpush.msra.mxu0 %v338
        %359 = vmatpush.msra.mxu0 %v337
        %360 = vmatmul.f32.gmra.mxu0 %v342
        %v361 = vpop.f32.mrf.mxu0
        %v362 = vadd.f32 0.0, %v361
        %363 = vdwg.mxu0
        %365 = vrot.lane.b32.xlu0 %v362, 96
        %v366 = vpop.permute.xlu0 %365
        %v368 = vmax.f32 %v362, %v366
        %369 = vrot.lane.b32.xlu0 %v362, 64
        %v370 = vpop.permute.xlu0 %369
        %v372 = vmax.f32 %v368, %v370
        %v373 = vsub.f32 %v362, %v372
        %v374 = vmul.f32 %v373, 1.442695
        %v375 = vpow.pop %v374
        %377 = vrot.lane.b32.xlu0 %v372, 32
        %v378 = vpop.permute.xlu0 %377
        %v380 = vsub.f32 %v362, %v378
        %v381 = vmul.f32 %v380, 1.442695
        %v382 = vpow.pop %v381
        %383 = vrot.lane.b32.xlu0 %v372, 64
        %v384 = vpop.permute.xlu0 %383
        %v386 = vsub.f32 %v362, %v384
        %v387 = vmul.f32 %v386, 1.442695
        %v388 = vpow.pop %v387
        %390 = vrot.lane.b32.xlu0 %v382, 96
        %v391 = vpop.permute.xlu0 %390
        %v393 = vadd.f32 %v375, %v391
        %395 = vrot.lane.b32.xlu0 %v388, 64
        %v396 = vpop.permute.xlu0 %395
        %v398 = vadd.f32 %v393, %v396
        %v399 = vrcp.pop %v398
        %v400 = vmul.f32 %v398, %v399
        %v401 = vsub.f32 1.0, %v400
        %v402 = vmul.f32 %v399, %v401
        %v403 = vadd.f32 %v399, %v402
        %vm404 = vweird.f32 %v398
        %vm405 = vweird.f32 %v399
        %vm406 = vmor %vm404, %vm405
        %v407 = vsel %vm406, %v399, %v403
        %v408 = vand.u32 2147483647, %v398
        %vm409 = vcmp.eq.f32.partialorder %v408, 8.507059e+37
        %v410 = vand.u32 %v398, 2147483648
        %v411 = vor.u32 1.1754944e-38, %v410
        %v412 = vsel %vm409, %v411, %v407
        %v413 = vmul.f32 1.0, %v412
        %v414 = vmul.f32 %v375, %v413
        %416 = vrot.lane.b32.xlu0 %v414, 32
        %v417 = vpop.permute.xlu0 %416
        %419 = vrot.lane.b32.xlu0 %v414, 64
        %v420 = vpop.permute.xlu0 %419
        %422 = vrot.lane.b32.xlu0 %v414, 96
        %v423 = vpop.permute.xlu0 %422
        %v425 = vsel %vm273, %v414, %v417
        %vm426 = vcmask 523264
        %v427 = vsel %vm426, %v425, %v420
        %vm428 = vcmask 785408
        %v429 = vsel %vm428, %v427, %v423
        %431 = vrot.lane.b32.xlu0 %v413, 32
        %v432 = vpop.permute.xlu0 %431
        %v434 = vmul.f32 %v382, %v432
        %436 = vrot.lane.b32.xlu0 %v434, 96
        %v437 = vpop.permute.xlu0 %436
        %439 = vrot.lane.b32.xlu0 %v434, 32
        %v440 = vpop.permute.xlu0 %439
        %442 = vrot.lane.b32.xlu0 %v434, 64
        %v443 = vpop.permute.xlu0 %442
        %v445 = vsel %vm273, %v437, %v434
        %v446 = vsel %vm426, %v445, %v440
        %v447 = vsel %vm428, %v446, %v443
        %448 = vrot.lane.b32.xlu0 %v413, 64
        %v449 = vpop.permute.xlu0 %448
        %v451 = vmul.f32 %v388, %v449
        %453 = vrot.lane.b32.xlu0 %v451, 64
        %v454 = vpop.permute.xlu0 %453
        %456 = vrot.lane.b32.xlu0 %v451, 96
        %v457 = vpop.permute.xlu0 %456
        %459 = vrot.lane.b32.xlu0 %v451, 32
        %v460 = vpop.permute.xlu0 %459
        %v462 = vsel %vm273, %v454, %v457
        %v463 = vsel %vm426, %v462, %v451
        %v464 = vsel %vm428, %v463, %v460
        %v465 = vperm.slane %v429, 0
        %v466 = vmul.f32 %v465, %v224
        %v467 = vmul.f32 %v465, %v225
        %v468 = vperm.slane %v447, 0
        %v469 = vmul.f32 %v468, %v235
        %v470 = vmul.f32 %v468, %v236
        %v471 = vadd.f32 %v466, %v469
        %v472 = vadd.f32 %v467, %v470
        %v473 = vperm.slane %v464, 0
        %v474 = vmul.f32 %v473, %v246
        %v475 = vmul.f32 %v473, %v247
        %v476 = vadd.f32 %v471, %v474
        %v477 = vadd.f32 %v472, %v475
        %478 = vst [vmem:[%s223] sm:$0xff] %v476
        %479 = vst [vmem:[%s223 + $0x8] sm:$0xff] %v477
        %s480 = sand.u32 %s97, 1
        %s481 = scalar_lea.sflag [#allocation4], %s480
        %s482 = sand.u32 %s97, 1
        %s483 = smul.addr %s482, 16
        %s484 = scalar_lea.vmem [#allocation8], %s483
        // Predicated region
        $region45: #{tpu_custom_call.1} parent=31 // pred_check
          %p485 = pneg %p107
        $region46: #{tpu_custom_call.1} parent=31 // pred_check_branch
          %487 = sbr.rel (%p485) target = $region48
        $region47: #{tpu_custom_call.1} parent=31 // pred_region
          %489 = vsyncadd %s481, 0
          %s490 = smul.addr %s21, 2
          %s491 = smul.addr %s490, 8
          %s492 = scalar_lea.hbm %s3, %s491
          %s493 = sshll.u32 %s484, 4
          %s494 = int_to_ptr.vmem [resolvable:$true] %s493
          %s495 = sshll.u32 %s492, 4
          %s496 = int_to_ptr.hbm [resolvable:$true] %s495
          %501 = dma.vmem_to_hbm [thread:$0]  %s494, 256, %s496, %s481, 128, 128, 8
        $region48: #{tpu_custom_call.1} parent=31 // pred_fallthru
          _
      $region32: #{tpu_custom_call.1} parent=5 // pred_fallthru
        _
      %p502 = scmp.le.s32.totalorder 2, %s16
      // Predicated region
      $region49: #{tpu_custom_call.1} parent=5 // pred_check
        %p503 = pneg %p502
      $region50: #{tpu_custom_call.1} parent=5 // pred_check_branch
        %505 = sbr.rel (%p503) target = $region52
      $region51: #{tpu_custom_call.1} parent=5 // pred_region
        %s506 = ssub.s32 %s16, 2
        // Predicated region
        $region53: #{tpu_custom_call.1} parent=51 // pred_check
          %p507 = pneg %p113
        $region54: #{tpu_custom_call.1} parent=51 // pred_check_branch
          %509 = sbr.rel (%p507) target = $region56
        $region55: #{tpu_custom_call.1} parent=51 // pred_region
          %s510 = sand.u32 %s98, 1
          %s511 = scalar_lea.sflag [#allocation4], %s510
          %s512 = sand.u32 %s98, 1
          %s513 = smul.addr %s512, 16
          %s514 = scalar_lea.vmem [#allocation8], %s513
          %516 = dma.done %s511, 256
        $region56: #{tpu_custom_call.1} parent=51 // pred_fallthru
          _
      $region52: #{tpu_custom_call.1} parent=5 // pred_fallthru
        _
    $region6: #{tpu_custom_call.1} parent=1 // loop_footer
      %s20 = sadd.s32 1, %s16
    $region7: #{tpu_custom_call.1} parent=1 // loop_footer_branch
      %15 = sbr.rel target = $region3
    $region8: #{tpu_custom_call.1} parent=1 // loop_exit
      _
    %517 = vsyncpa [#allocation3], 1
    %s518 = scalar_lea.sflag [#allocation3], 1
    %519 = vsyncpa %s518, 1
    %520 = vsyncpa [#allocation6], 1
    %521 = vsyncpa [#allocation4], 1
    %s522 = scalar_lea.sflag [#allocation4], 1
    %523 = vsyncpa %s522, 1

</llo_original>
